<compile_context>
chip_gen: v6e
topology: v6e:2x2x1
jax: 0.10.0
libtpu: 0.0.40
codegen_flags: <defaults>
</compile_context>

<pallas_src>
import numpy as np
import jax
import jax.numpy as jnp
from jax.experimental import pallas as pl
from jax.experimental.pallas import tpu as pltpu


def _ff_kernel(x_ref, w1t_ref, w3t_ref, bnb_ref, o_ref):
    # x_ref:   (in_ch, TM)      spatial on lanes, channels on sublanes
    # w1t_ref: (out_ch, in_ch)  first 1x1 conv, transposed
    # w3t_ref: (out_ch, out_ch) second 1x1 conv with depthwise + BN scale folded in
    # bnb_ref: (out_ch, 1)      folded BN bias
    # o_ref:   (out_ch, TM)
    h = jnp.dot(w1t_ref[...], x_ref[...], preferred_element_type=jnp.float32)  # 1x1 conv
    h = jnp.maximum(h, 0.0)                                                    # ReLU
    h = jnp.dot(w3t_ref[...], h, preferred_element_type=jnp.float32)           # dw·1x1·BN-scale
    h = h + bnb_ref[...]                                                       # BN bias
    o_ref[...] = jnp.maximum(h, 0.0).astype(o_ref.dtype)                       # ReLU


def _nearest_resize_to_scale(x, factor):
    """PyTorch F.interpolate(mode='nearest') with integer or 1/2**k scale factor (NCHW)."""
    if factor >= 1:
        f = int(factor)
        if f > 1:
            x = jnp.repeat(jnp.repeat(x, f, axis=2), f, axis=3)
        return x
    step = int(round(1.0 / factor))
    return x[:, :, ::step, ::step]


def _round_up(a, b):
    return pl.cdiv(a, b) * b


def _choose_lane_tile(hw, in_ch, out_ch, n_batch,
                      cap=4096, vmem_budget=8 * 1024 * 1024):
    """Pick the spatial (lane) tile: multiple of 128, VMEM-bounded, >=2 grid steps."""
    hw_pad128 = _round_up(hw, 128)
    # double-buffered input + output columns per lane (f32)
    per_lane_bytes = (in_ch + out_ch) * 4 * 2
    tm = max(128, (vmem_budget // per_lane_bytes) // 128 * 128)
    tm = min(tm, cap, hw_pad128)
    # keep at least 2 total grid steps (batch x spatial tiles) so megacore
    # parts have parallel work on both TensorCores.
    while n_batch * pl.cdiv(hw_pad128, tm) < 2 and tm > 128:
        tm = max(128, (tm // 2) // 128 * 128)
    return tm


def ff_module_forward(inf, params, scale):
    """inf: list of 4 NCHW tensors (branch i at resolution H/2**i)."""
    w1, dw, w3, bn_scale, bn_bias = params
    # --- glue: nearest resize each branch to branch-`scale` resolution, concat channels ---
    ff = [_nearest_resize_to_scale(inf[i], 2.0 ** (i - scale)) for i in range(4)]
    aa = jnp.concatenate(ff, axis=1)                         # (N, in_ch, Ht, Wt)
    N, in_ch, Ht, Wt = aa.shape
    out_ch = w1.shape[1]

    # Fold depthwise 1x1 conv (per-channel scale; the module passes bias=False) and the
    # inference BatchNorm scale into the second conv weight (one-time O(out_ch^2) work):
    #   ((relu(x@W1) * dw) @ W3) * s + b  ==  relu(x@W1) @ (dw^T * W3 * s) + b
    w3_folded = dw.reshape(-1, 1) * w3 * bn_scale            # (out_ch, out_ch)

    # Channels-first matmul layout (spatial on lanes): transpose weights once.
    w1t = jnp.transpose(w1)                                  # (out_ch, in_ch)
    w3t = jnp.transpose(w3_folded)                           # (out_ch, out_ch)
    bnb = bn_bias.reshape(out_ch, 1)

    HW = Ht * Wt
    tm = _choose_lane_tile(HW, in_ch, out_ch, N)
    HW_pad = _round_up(HW, tm)
    x = aa.reshape(N, in_ch, HW)
    if HW_pad != HW:
        x = jnp.pad(x, ((0, 0), (0, 0), (0, HW_pad - HW)))

    n_tiles = HW_pad // tm
    flops = 2 * N * HW_pad * (in_ch * out_ch + out_ch * out_ch) + 3 * N * HW_pad * out_ch
    bytes_accessed = 4 * (N * HW_pad * (in_ch + out_ch)
                          + in_ch * out_ch + out_ch * out_ch + out_ch)

    out_flat = pl.pallas_call(
        _ff_kernel,
        out_shape=jax.ShapeDtypeStruct((N, out_ch, HW_pad), jnp.float32),
        grid_spec=pltpu.PrefetchScalarGridSpec(
            num_scalar_prefetch=0,
            grid=(N, n_tiles),
            in_specs=[
                pl.BlockSpec((None, in_ch, tm), lambda b, i: (b, 0, i)),
                pl.BlockSpec((out_ch, in_ch), lambda b, i: (0, 0)),
                pl.BlockSpec((out_ch, out_ch), lambda b, i: (0, 0)),
                pl.BlockSpec((out_ch, 1), lambda b, i: (0, 0)),
            ],
            out_specs=pl.BlockSpec((None, out_ch, tm), lambda b, i: (b, 0, i)),
        ),
        compiler_params=pltpu.CompilerParams(
            dimension_semantics=("parallel", "parallel")),
        cost_estimate=pl.CostEstimate(
            flops=int(flops), transcendentals=0, bytes_accessed=int(bytes_accessed)),
    )(x, w1t, w3t, bnb)

    # Crop spatial padding; result is already NCHW.
    return out_flat[:, :, :HW].reshape(N, out_ch, Ht, Wt)


def ff_module_reference(inf, params, scale):
    """Pure-JAX reference of the same computation (unfolded), for correctness check."""
    w1, dw, w3, bn_scale, bn_bias = params
    ff = [_nearest_resize_to_scale(inf[i], 2.0 ** (i - scale)) for i in range(4)]
    aa = jnp.concatenate(ff, axis=1)
    x = jnp.transpose(aa, (0, 2, 3, 1))                      # NHWC
    h = jnp.maximum(x @ w1, 0.0)
    h = h * dw
    h = h @ w3
    h = h * bn_scale + bn_bias
    h = jnp.maximum(h, 0.0)
    return jnp.transpose(h, (0, 3, 1, 2))


if __name__ == "__main__":
    # Module config (small): channels per branch, fuse into branch `scale`.
    channels = (4, 8, 16, 32)
    scale = 0
    num_branch = 4
    in_ch = sum(channels)            # 60
    out_ch = channels[scale]         # 4

    key = jax.random.PRNGKey(0)
    keys = jax.random.split(key, 12)

    # Inputs: branch i is (N, channels[i], H/2**i, W/2**i), NCHW like PyTorch.
    N, H, W = 2, 16, 16
    inf = [
        jax.random.normal(keys[i], (N, channels[i], H // 2 ** i, W // 2 ** i), jnp.float32)
        for i in range(4)
    ]

    # Deterministic parameters (shapes from __init__ of dw_cnv):
    #   Conv2d(in_ch, out_ch, 1, bias=False)                 -> w1 (in_ch, out_ch)
    #   Conv2d(out_ch, out_ch, 1, groups=out_ch, bias=False) -> dw (1, out_ch)
    #   Conv2d(out_ch, out_ch, 1, bias=False)                -> w3 (out_ch, out_ch)
    #   BatchNorm(out_ch) inference: folded into scale/bias vectors.
    w1 = 0.1 * jax.random.normal(keys[4], (in_ch, out_ch), jnp.float32)
    dw = 0.5 + 0.1 * jax.random.normal(keys[5], (1, out_ch), jnp.float32)
    w3 = 0.1 * jax.random.normal(keys[6], (out_ch, out_ch), jnp.float32)
    gamma = 1.0 + 0.1 * jax.random.normal(keys[7], (out_ch,), jnp.float32)
    beta = 0.1 * jax.random.normal(keys[8], (out_ch,), jnp.float32)
    running_mean = 0.05 * jax.random.normal(keys[9], (out_ch,), jnp.float32)
    running_var = 1.0 + 0.1 * jnp.abs(jax.random.normal(keys[10], (out_ch,), jnp.float32))
    eps = 1e-5
    bn_scale = (gamma / jnp.sqrt(running_var + eps)).reshape(1, out_ch)
    bn_bias = (beta - running_mean * gamma / jnp.sqrt(running_var + eps)).reshape(1, out_ch)

    params = (w1, dw, w3, bn_scale, bn_bias)

    out = jax.block_until_ready(ff_module_forward(inf, params, scale))
    ref = jax.block_until_ready(ff_module_reference(inf, params, scale))

    assert out.shape == (N, out_ch, H, W), out.shape
    np.testing.assert_allclose(np.asarray(out), np.asarray(ref), rtol=1e-4, atol=1e-5)

    print("KERNEL_OK")
</pallas_src>

<mosaic_0001>
module attributes {stable_mosaic.version = 11 : i64} {
  func.func @_ff_kernel(%arg0: i32, %arg1: i32, %arg2: memref<1x60x256xf32, #tpu.memory_space<vmem>>, %arg3: memref<4x60xf32, #tpu.memory_space<vmem>>, %arg4: memref<4x4xf32, #tpu.memory_space<vmem>>, %arg5: memref<4x1xf32, #tpu.memory_space<vmem>>, %arg6: memref<1x4x256xf32, #tpu.memory_space<vmem>>) attributes {dimension_semantics = [#tpu.dimension_semantics<parallel>, #tpu.dimension_semantics<parallel>], iteration_bounds = array<i64: 2, 1>, scalar_prefetch = 0 : i64, scratch_operands = 0 : i64, tpu.core_type = #tpu.core_type<tc>, window_params = [{transform_indices = @transform_0, window_bounds = array<i64: 1, 60, 256>}, {pipeline_mode = #tpu.pipeline_mode<synchronous>, transform_indices = @transform_1, window_bounds = array<i64: 4, 60>}, {pipeline_mode = #tpu.pipeline_mode<synchronous>, transform_indices = @transform_2, window_bounds = array<i64: 4, 4>}, {pipeline_mode = #tpu.pipeline_mode<synchronous>, transform_indices = @transform_3, window_bounds = array<i64: 4, 1>}, {transform_indices = @transform_4, window_bounds = array<i64: 1, 4, 256>}]} {
    %c0 = arith.constant 0 : index
    %c0_0 = arith.constant 0 : index
    %0 = vector.load %arg3[%c0, %c0_0] : memref<4x60xf32, #tpu.memory_space<vmem>>, vector<4x60xf32>
    %c0_1 = arith.constant 0 : index
    %c0_2 = arith.constant 0 : index
    %c0_3 = arith.constant 0 : index
    %1 = vector.load %arg2[%c0_1, %c0_2, %c0_3] : memref<1x60x256xf32, #tpu.memory_space<vmem>>, vector<1x60x256xf32>
    %2 = vector.shape_cast %1 : vector<1x60x256xf32> to vector<60x256xf32>
    %cst = arith.constant dense<0.000000e+00> : vector<4x256xf32>
    %3 = tpu.matmul %0, %2, %cst {dimension_numbers = #tpu.dot_dimension_numbers<[1], [0], [0], [1], [0, 0, 1, 1], [], []>} : vector<4x60xf32>, vector<60x256xf32>, vector<4x256xf32> -> vector<4x256xf32>
    %cst_4 = arith.constant 0.000000e+00 : f32
    %4 = vector.broadcast %cst_4 : f32 to vector<4x256xf32>
    %5 = arith.maximumf %3, %4 : vector<4x256xf32>
    %c0_5 = arith.constant 0 : index
    %c0_6 = arith.constant 0 : index
    %6 = vector.load %arg4[%c0_5, %c0_6] : memref<4x4xf32, #tpu.memory_space<vmem>>, vector<4x4xf32>
    %cst_7 = arith.constant dense<0.000000e+00> : vector<4x256xf32>
    %7 = tpu.matmul %6, %5, %cst_7 {dimension_numbers = #tpu.dot_dimension_numbers<[1], [0], [0], [1], [0, 0, 1, 1], [], []>} : vector<4x4xf32>, vector<4x256xf32>, vector<4x256xf32> -> vector<4x256xf32>
    %c0_8 = arith.constant 0 : index
    %c0_9 = arith.constant 0 : index
    %8 = vector.load %arg5[%c0_8, %c0_9] : memref<4x1xf32, #tpu.memory_space<vmem>>, vector<4x1xf32>
    %9 = vector.broadcast %8 : vector<4x1xf32> to vector<4x256xf32>
    %10 = arith.addf %7, %9 : vector<4x256xf32>
    %cst_10 = arith.constant 0.000000e+00 : f32
    %11 = vector.broadcast %cst_10 : f32 to vector<4x256xf32>
    %12 = arith.maximumf %10, %11 : vector<4x256xf32>
    %c0_11 = arith.constant 0 : index
    %c0_12 = arith.constant 0 : index
    %c0_13 = arith.constant 0 : index
    %13 = vector.load %arg6[%c0_11, %c0_12, %c0_13] : memref<1x4x256xf32, #tpu.memory_space<vmem>>, vector<1x4x256xf32>
    %14 = vector.shape_cast %13 : vector<1x4x256xf32> to vector<4x256xf32>
    %15 = vector.shape_cast %12 : vector<4x256xf32> to vector<1x4x256xf32>
    tpu.vector_store %arg6[%c0_11, %c0_12, %c0_13], %15 {strides = array<i32>} : memref<1x4x256xf32, #tpu.memory_space<vmem>>, vector<1x4x256xf32>,
    return
  }
  func.func @transform_0(%arg0: i32, %arg1: i32) -> (i32, i32, i32) {
    %c0_i32 = arith.constant 0 : i32
    %c0_i32_0 = arith.constant 0 : i32
    return %arg0, %c0_i32, %arg1 : i32, i32, i32
  }
  func.func @transform_1(%arg0: i32, %arg1: i32) -> (i32, i32) {
    %c0_i32 = arith.constant 0 : i32
    %c0_i32_0 = arith.constant 0 : i32
    %c0_i32_1 = arith.constant 0 : i32
    return %c0_i32, %c0_i32_0 : i32, i32
  }
  func.func @transform_2(%arg0: i32, %arg1: i32) -> (i32, i32) {
    %c0_i32 = arith.constant 0 : i32
    %c0_i32_0 = arith.constant 0 : i32
    %c0_i32_1 = arith.constant 0 : i32
    return %c0_i32, %c0_i32_0 : i32, i32
  }
  func.func @transform_3(%arg0: i32, %arg1: i32) -> (i32, i32) {
    %c0_i32 = arith.constant 0 : i32
    %c0_i32_0 = arith.constant 0 : i32
    %c0_i32_1 = arith.constant 0 : i32
    return %c0_i32, %c0_i32_0 : i32, i32
  }
  func.func @transform_4(%arg0: i32, %arg1: i32) -> (i32, i32, i32) {
    %c0_i32 = arith.constant 0 : i32
    %c0_i32_0 = arith.constant 0 : i32
    return %arg0, %c0_i32, %arg1 : i32, i32, i32
  }
}

</mosaic_0001>

<llo_original>
// kernel: tpu_custom_call.1
$region0: #{tpu_custom_call.1}
  #allocation0 [shape = 'u32[]', space=smem, size = 0x4, offset = 0x4, fixed_abs, tag = 'smem constant byte address 0x4 - core index']
  #allocation1 [shape = 'u32[144,128]{1,0:T(1,128)}', space=vmem, size = 0x12000, scoped, tag = 'internal scratch']
  %s0 = inlined_call_operand.vmem [shape: f32[2,60,256], index: 0, kind: input, shape index: {}]
  %s1 = inlined_call_operand.vmem [shape: f32[4,60], index: 1, kind: input, shape index: {}]
  %s2 = inlined_call_operand.vmem [shape: f32[4,4], index: 2, kind: input, shape index: {}]
  %s3 = inlined_call_operand.vmem [shape: f32[4,1], index: 3, kind: input, shape index: {}]
  %s4 = inlined_call_operand.hbm [shape: f32[2,4,256], index: 4, kind: output, shape index: {}]
  %s5 = sld [smem:[#allocation0]]
  $region49: #{tpu_custom_call.1} parent=0
    _
  %s7 = ssub.s32 1, %s5
  %s8 = scalar_select 0, %s7, %s5
  $region1: #{tpu_custom_call.1} parent=0
    #allocation2 [shape = 'u8[8192]{0}', space=vmem, size = 0x2000, scoped, tag = 'output window, operand 0']
    #allocation3 [shape = 's32[2]{0}', space=sflag, size = 0x8, scoped, tag = 'scoped memory for tpu_custom_call.1']
    %9 = vsyncpa [#allocation3], 0
    %s10 = scalar_lea.sflag [#allocation3], 1
    %11 = vsyncpa %s10, 0
    loop: start=0, step=1, limit=4
    $region2: #{tpu_custom_call.1} parent=1 // loop_pre_header
      _
    $region3: #{tpu_custom_call.1} parent=1 // loop_header
      %s13 = sphi 0, %s17
      %p14 = scmp.ge.s32.totalorder %s13, 4
      %s20 = sphi 0, %s32
      %s21 = sphi 0, %s28
      %s22 = sphi 0, %s20
      %s23 = sphi 0, %s21
      %s24 = sphi 0, %s22
      %s25 = sphi 0, %s23
      %s37 = sphi 0, %s39
      %s40 = sphi 0, %s37
      %s41 = sphi 0, %s40
      %s57 = sphi 0, %s41
      %s61 = sphi 0, %s61
      %s63 = sphi 0, %s61
      %s64 = sphi 0, %s63
      %s78 = sphi 0, %s64
      %s82 = sphi 0, %s82
      %s84 = sphi 0, %s82
      %s85 = sphi 0, %s84
      %s99 = sphi 0, %s85
      %s103 = sphi 0, %s103
      %s105 = sphi 0, %s103
      %s106 = sphi 0, %s105
      %s120 = sphi 0, %s106
      %s128 = sphi 0, %s130
      %s131 = sphi 0, %s128
      %s132 = sphi 0, %s131
      %s148 = sphi 0, %s132
    $region4: #{tpu_custom_call.1} parent=1 // loop_header_branch
      %16 = sbr.rel (%p14) target = $region8
    $region5: #{tpu_custom_call.1} parent=1 // loop_body
      %s18 = ssub.s32 %s13, 1
      %s19 = ssub.s32 %s13, 2
      %s26 = sadd.s32 1, %s21
      %p27 = scmp.ge.s32.totalorder %s26, 1
      %s28 = scalar_select %p27, 0, %s26
      %s29 = sadd.s32 1, %s20
      %s30 = scalar_select %p27, %s29, %s20
      %p31 = scmp.ge.s32.totalorder %s30, 2
      %s32 = scalar_select %p31, 0, %s30
      %s33 = ssub.s32 %s20, %s32
      %s34 = ssub.s32 %s21, %s28
      %s35 = sor.u32 %s33, %s34
      %p36 = scmp.eq.s32.totalorder %s35, 0
      %s38 = sadd.s32 %s37, 1
      %s39 = scalar_select %p36, %s37, %s38
      %p42 = pneg %p36
      %p43 = scmp.eq.s32.totalorder %s13, 1
      %p44 = por %p42, %p43
      %p45 = scmp.ne.s32.totalorder %s37, %s40
      %p46 = scmp.eq.s32.totalorder %s13, 0
      %p47 = por %p45, %p46
      %p48 = scmp.ne.s32.totalorder %s37, %s40
      %p49 = scmp.eq.s32.totalorder %s18, 1
      %p50 = por %p48, %p49
      %p51 = scmp.ne.s32.totalorder %s40, %s41
      %p52 = scmp.eq.s32.totalorder %s18, 0
      %p53 = por %p51, %p52
      %p54 = scmp.ne.s32.totalorder %s40, %s41
      %p55 = scmp.eq.s32.totalorder %s19, 1
      %p56 = por %p54, %p55
      %p58 = scmp.ne.s32.totalorder %s41, %s57
      %p59 = scmp.eq.s32.totalorder %s19, 0
      %p60 = por %p58, %p59
      %s62 = sadd.s32 %s61, 1
      %p65 = scmp.eq.s32.totalorder %s13, 1
      %p66 = scmp.ne.s32.totalorder %s61, %s63
      %p67 = scmp.eq.s32.totalorder %s13, 0
      %p68 = por %p66, %p67
      %p69 = scmp.ne.s32.totalorder %s61, %s63
      %p70 = scmp.eq.s32.totalorder %s18, 1
      %p71 = por %p69, %p70
      %p72 = scmp.ne.s32.totalorder %s63, %s64
      %p73 = scmp.eq.s32.totalorder %s18, 0
      %p74 = por %p72, %p73
      %p75 = scmp.ne.s32.totalorder %s63, %s64
      %p76 = scmp.eq.s32.totalorder %s19, 1
      %p77 = por %p75, %p76
      %p79 = scmp.ne.s32.totalorder %s64, %s78
      %p80 = scmp.eq.s32.totalorder %s19, 0
      %p81 = por %p79, %p80
      %s83 = sadd.s32 %s82, 1
      %p86 = scmp.eq.s32.totalorder %s13, 1
      %p87 = scmp.ne.s32.totalorder %s82, %s84
      %p88 = scmp.eq.s32.totalorder %s13, 0
      %p89 = por %p87, %p88
      %p90 = scmp.ne.s32.totalorder %s82, %s84
      %p91 = scmp.eq.s32.totalorder %s18, 1
      %p92 = por %p90, %p91
      %p93 = scmp.ne.s32.totalorder %s84, %s85
      %p94 = scmp.eq.s32.totalorder %s18, 0
      %p95 = por %p93, %p94
      %p96 = scmp.ne.s32.totalorder %s84, %s85
      %p97 = scmp.eq.s32.totalorder %s19, 1
      %p98 = por %p96, %p97
      %p100 = scmp.ne.s32.totalorder %s85, %s99
      %p101 = scmp.eq.s32.totalorder %s19, 0
      %p102 = por %p100, %p101
      %s104 = sadd.s32 %s103, 1
      %p107 = scmp.eq.s32.totalorder %s13, 1
      %p108 = scmp.ne.s32.totalorder %s103, %s105
      %p109 = scmp.eq.s32.totalorder %s13, 0
      %p110 = por %p108, %p109
      %p111 = scmp.ne.s32.totalorder %s103, %s105
      %p112 = scmp.eq.s32.totalorder %s18, 1
      %p113 = por %p111, %p112
      %p114 = scmp.ne.s32.totalorder %s105, %s106
      %p115 = scmp.eq.s32.totalorder %s18, 0
      %p116 = por %p114, %p115
      %p117 = scmp.ne.s32.totalorder %s105, %s106
      %p118 = scmp.eq.s32.totalorder %s19, 1
      %p119 = por %p117, %p118
      %p121 = scmp.ne.s32.totalorder %s106, %s120
      %p122 = scmp.eq.s32.totalorder %s19, 0
      %p123 = por %p121, %p122
      %s124 = ssub.s32 %s20, %s32
      %s125 = ssub.s32 %s21, %s28
      %s126 = sor.u32 %s124, %s125
      %p127 = scmp.eq.s32.totalorder %s126, 0
      %s129 = sadd.s32 %s128, 1
      %s130 = scalar_select %p127, %s128, %s129
      %p133 = pneg %p127
      %p134 = scmp.eq.s32.totalorder %s13, 1
      %p135 = por %p133, %p134
      %p136 = scmp.ne.s32.totalorder %s128, %s131
      %p137 = scmp.eq.s32.totalorder %s13, 0
      %p138 = por %p136, %p137
      %p139 = scmp.ne.s32.totalorder %s128, %s131
      %p140 = scmp.eq.s32.totalorder %s18, 1
      %p141 = por %p139, %p140
      %p142 = scmp.ne.s32.totalorder %s131, %s132
      %p143 = scmp.eq.s32.totalorder %s18, 0
      %p144 = por %p142, %p143
      %p145 = scmp.ne.s32.totalorder %s131, %s132
      %p146 = scmp.eq.s32.totalorder %s19, 1
      %p147 = por %p145, %p146
      %p149 = scmp.ne.s32.totalorder %s132, %s148
      %p150 = scmp.eq.s32.totalorder %s19, 0
      %p151 = por %p149, %p150
      %p152 = scmp.le.s32.totalorder 1, %s13
      %p153 = scmp.lt.s32.totalorder %s13, 3
      %p154 = pnand %p152, %p153
      %p155 = pneg %p154
      // Predicated region
      $region9: #{tpu_custom_call.1} parent=5 // pred_check
        _
      $region10: #{tpu_custom_call.1} parent=5 // pred_check_branch
        %157 = sbr.rel (%p154) target = $region12
      $region11: #{tpu_custom_call.1} parent=5 // pred_region
        %s158 = ssub.s32 %s13, 1
        // Predicated region
        $region13: #{tpu_custom_call.1} parent=11 // pred_check
          %p159 = pneg %p74
        $region14: #{tpu_custom_call.1} parent=11 // pred_check_branch
          %161 = sbr.rel (%p159) target = $region16
        $region15: #{tpu_custom_call.1} parent=11 // pred_region
          _
        $region16: #{tpu_custom_call.1} parent=11 // pred_fallthru
          _
        // Predicated region
        $region17: #{tpu_custom_call.1} parent=11 // pred_check
          %p162 = pneg %p95
        $region18: #{tpu_custom_call.1} parent=11 // pred_check_branch
          %164 = sbr.rel (%p162) target = $region20
        $region19: #{tpu_custom_call.1} parent=11 // pred_region
          _
        $region20: #{tpu_custom_call.1} parent=11 // pred_fallthru
          _
        // Predicated region
        $region21: #{tpu_custom_call.1} parent=11 // pred_check
          %p165 = pneg %p116
        $region22: #{tpu_custom_call.1} parent=11 // pred_check_branch
          %167 = sbr.rel (%p165) target = $region24
        $region23: #{tpu_custom_call.1} parent=11 // pred_region
          _
        $region24: #{tpu_custom_call.1} parent=11 // pred_fallthru
          _
      $region12: #{tpu_custom_call.1} parent=5 // pred_fallthru
        _
      %p168 = scmp.lt.s32.totalorder %s13, 2
      // Predicated region
      $region25: #{tpu_custom_call.1} parent=5 // pred_check
        %p169 = pneg %p168
      $region26: #{tpu_custom_call.1} parent=5 // pred_check_branch
        %171 = sbr.rel (%p169) target = $region28
      $region27: #{tpu_custom_call.1} parent=5 // pred_region
        // Predicated region
        $region29: #{tpu_custom_call.1} parent=27 // pred_check
          %p172 = pneg %p47
        $region30: #{tpu_custom_call.1} parent=27 // pred_check_branch
          %174 = sbr.rel (%p172) target = $region32
        $region31: #{tpu_custom_call.1} parent=27 // pred_region
          %s175 = smul.u32 2, %s21
          %p176 = scmp.lt.s32.totalorder %s20, 1
          %s177 = scalar_select %p176, %s20, 1
          %p178 = scmp.lt.s32.totalorder %s175, 1
          %s179 = scalar_select %p178, %s175, 1
          %s180 = smul.addr %s177, 16
          %s181 = sadd.s32 %s179, %s180
          %s182 = smul.addr %s181, 8
          %s183 = scalar_lea.vmem %s0, %s182
          %s184 = smul.u32 2, %s21
        $region32: #{tpu_custom_call.1} parent=27 // pred_fallthru
          _
      $region28: #{tpu_custom_call.1} parent=5 // pred_fallthru
        _
      %p185 = scmp.le.s32.totalorder 1, %s13
      %p186 = scmp.lt.s32.totalorder %s13, 3
      %p187 = pnand %p185, %p186
      %p188 = pneg %p187
      // Predicated region
      $region33: #{tpu_custom_call.1} parent=5 // pred_check
        _
      $region34: #{tpu_custom_call.1} parent=5 // pred_check_branch
        %190 = sbr.rel (%p187) target = $region36
      $region35: #{tpu_custom_call.1} parent=5 // pred_region
        %s191 = ssub.s32 %s13, 1
        %s192 = smul.u32 2, %s23
        %p193 = scmp.lt.s32.totalorder %s22, 1
        %s194 = scalar_select %p193, %s22, 1
        %p195 = scmp.lt.s32.totalorder %s192, 1
        %s196 = scalar_select %p195, %s192, 1
        %s197 = smul.addr %s194, 16
        %s198 = sadd.s32 %s196, %s197
        %s199 = smul.addr %s198, 8
        %s200 = scalar_lea.vmem %s0, %s199
        %p201 = pneg %p53
        %p202 = pneg %p50
        %p203 = pneg %p74
        %p204 = pneg %p71
        %p205 = pneg %p95
        %p206 = pneg %p92
        %p207 = pneg %p116
        %p208 = pneg %p113
        %p209 = pneg %p144
        %p210 = pneg %p141
        %s211 = sand.u32 %s131, 1
        %s212 = scalar_lea.sflag [#allocation3], %s211
        %s213 = sand.u32 %s131, 1
        %s214 = smul.addr %s213, 8
        %s215 = scalar_lea.vmem [#allocation2], %s214
        %s216 = smul.u32 2, %s23
        %p217 = scmp.lt.s32.totalorder %s22, 1
        %s218 = scalar_select %p217, %s22, 1
        %p219 = scmp.lt.s32.totalorder %s216, 1
        %s220 = scalar_select %p219, %s216, 1
        %s221 = smul.addr %s218, 16
        %s222 = sadd.s32 %s220, %s221
        %s223 = smul.addr %s222, 8
        %s224 = scalar_lea.vmem %s0, %s223
        %s225 = smul.u32 2, %s23
        %s226 = smul.u32 2, %s23
        %v227 = vld [vmem:[%s1] sm:$0xf]
        %v228 = vld [vmem:[%s224] sm:$0xff]
        %v229 = vld [vmem:[%s224 + $0x8] sm:$0xff]
        %v230 = vld [vmem:[%s224 + $0x10] sm:$0xff]
        %v231 = vld [vmem:[%s224 + $0x18] sm:$0xff]
        %v232 = vld [vmem:[%s224 + $0x20] sm:$0xff]
        %v233 = vld [vmem:[%s224 + $0x28] sm:$0xff]
        %v234 = vld [vmem:[%s224 + $0x30] sm:$0xff]
        %v235 = vld [vmem:[%s224 + $0x38] sm:$0xff]
        %v236 = vld [vmem:[%s224 + $0x40] sm:$0xff]
        %v237 = vld [vmem:[%s224 + $0x48] sm:$0xff]
        %v238 = vld [vmem:[%s224 + $0x50] sm:$0xff]
        %v239 = vld [vmem:[%s224 + $0x58] sm:$0xff]
        %v240 = vld [vmem:[%s224 + $0x60] sm:$0xff]
        %v241 = vld [vmem:[%s224 + $0x68] sm:$0xff]
        %v242 = vld [vmem:[%s224 + $0x70] sm:$0xf]
        %v243 = vld [vmem:[%s224 + $0x78] sm:$0xf]
        %vm244 = vcmask 490496
        %v246 = vsel %vm244, %v227, 0
        %vm248 = vcmask 1043456
        %v250 = vsel %vm248, %v242, 0
        %v253 = vsel %vm248, %v243, 0
        %255 = vmatprep.subr.mxu0 0.0
        %256 = vmatpush1.msra.mxu0 0.0
        %257 = vmatprep.subr.mxu0 0.0
        %258 = vmatpush1.msra.mxu0 0.0
        %259 = vmatprep.subr.mxu0 0.0
        %260 = vmatpush1.msra.mxu0 0.0
        %261 = vmatprep.subr.mxu0 0.0
        %262 = vmatpush1.msra.mxu0 0.0
        %263 = vmatprep.subr.mxu0 0.0
        %264 = vmatpush1.msra.mxu0 0.0
        %265 = vmatprep.subr.mxu0 0.0
        %266 = vmatpush1.msra.mxu0 0.0
        %267 = vmatprep.subr.mxu0 0.0
        %268 = vmatpush1.msra.mxu0 0.0
        %269 = vmatprep.subr.mxu0 0.0
        %270 = vmatpush1.msra.mxu0 0.0
        %271 = vmatprep.subr.mxu0 %v253
        %272 = vmatpush1.msra.mxu0 %v250
        %273 = vmatprep.subr.mxu0 %v241
        %274 = vmatpush1.msra.mxu0 %v240
        %275 = vmatprep.subr.mxu0 %v239
        %276 = vmatpush1.msra.mxu0 %v238
        %277 = vmatprep.subr.mxu0 %v237
        %278 = vmatpush1.msra.mxu0 %v236
        %279 = vmatprep.subr.mxu0 %v235
        %280 = vmatpush1.msra.mxu0 %v234
        %281 = vmatprep.subr.mxu0 %v233
        %282 = vmatpush1.msra.mxu0 %v232
        %283 = vmatprep.subr.mxu0 %v231
        %284 = vmatpush1.msra.mxu0 %v230
        %285 = vmatprep.subr.mxu0 %v229
        %286 = vmatpush1.msra.mxu0 %v228
        %287 = vmatprep.subr.mxu0 0.0
        %288 = vmatpush2.msra.mxu0 0.0
        %289 = vmatprep.subr.mxu0 0.0
        %290 = vmatpush2.msra.mxu0 0.0
        %291 = vmatprep.subr.mxu0 0.0
        %292 = vmatpush2.msra.mxu0 0.0
        %293 = vmatprep.subr.mxu0 0.0
        %294 = vmatpush2.msra.mxu0 0.0
        %295 = vmatprep.subr.mxu0 0.0
        %296 = vmatpush2.msra.mxu0 0.0
        %297 = vmatprep.subr.mxu0 0.0
        %298 = vmatpush2.msra.mxu0 0.0
        %299 = vmatprep.subr.mxu0 0.0
        %300 = vmatpush2.msra.mxu0 0.0
        %301 = vmatprep.subr.mxu0 0.0
        %302 = vmatpush2.msra.mxu0 0.0
        %303 = vmatprep.subr.mxu0 0.0
        %304 = vmatpush2.msra.mxu0 0.0
        %305 = vmatprep.subr.mxu0 0.0
        %306 = vmatpush2.msra.mxu0 0.0
        %307 = vmatprep.subr.mxu0 0.0
        %308 = vmatpush2.msra.mxu0 0.0
        %309 = vmatprep.subr.mxu0 0.0
        %310 = vmatpush2.msra.mxu0 0.0
        %311 = vmatprep.subr.mxu0 0.0
        %312 = vmatpush2.msra.mxu0 0.0
        %313 = vmatprep.subr.mxu0 0.0
        %314 = vmatpush2.msra.mxu0 0.0
        %315 = vmatprep.subr.mxu0 0.0
        %316 = vmatpush2.msra.mxu0 0.0
        %317 = vmatprep.subr.mxu0 0.0
        %318 = vmatpush2.msra.mxu0 0.0
        %319 = vmatprep.mubr.f32.mxu0 0.0
        %320 = vmatmul.mubr.f32.gmra.mxu0 %v246
        %v321 = vpop.f32.mrf.mxu0
        %v322 = vadd.f32 0.0, %v321
        %v323 = vpop.f32.mrf.mxu0
        %v324 = vadd.f32 0.0, %v323
        %325 = vdwg.mxu0
        %v326 = vmax.f32 %v322, 0.0
        %v327 = vmax.f32 %v324, 0.0
        %v328 = vld [vmem:[%s2] sm:$0xf]
        %v329 = vld [vmem:[%s3] sm:$0xf]
        %331 = vset.pattern.permute.xlu0 0
        %332 = vperm.xlu0 %331, %v329
        %v333 = vpop.permute.xlu0 %332
        %vm335 = vcmask 31744
        %v337 = vsel %vm335, %v328, 0
        %v340 = vsel %vm248, %v326, 0
        %v343 = vsel %vm248, %v327, 0
        %345 = vmatprep.subr.mxu0 0.0
        %346 = vmatpush1.msra.mxu0 0.0
        %347 = vmatprep.subr.mxu0 0.0
        %348 = vmatpush1.msra.mxu0 0.0
        %349 = vmatprep.subr.mxu0 0.0
        %350 = vmatpush1.msra.mxu0 0.0
        %351 = vmatprep.subr.mxu0 0.0
        %352 = vmatpush1.msra.mxu0 0.0
        %353 = vmatprep.subr.mxu0 0.0
        %354 = vmatpush1.msra.mxu0 0.0
        %355 = vmatprep.subr.mxu0 0.0
        %356 = vmatpush1.msra.mxu0 0.0
        %357 = vmatprep.subr.mxu0 0.0
        %358 = vmatpush1.msra.mxu0 0.0
        %359 = vmatprep.subr.mxu0 0.0
        %360 = vmatpush1.msra.mxu0 0.0
        %361 = vmatprep.subr.mxu0 0.0
        %362 = vmatpush1.msra.mxu0 0.0
        %363 = vmatprep.subr.mxu0 0.0
        %364 = vmatpush1.msra.mxu0 0.0
        %365 = vmatprep.subr.mxu0 0.0
        %366 = vmatpush1.msra.mxu0 0.0
        %367 = vmatprep.subr.mxu0 0.0
        %368 = vmatpush1.msra.mxu0 0.0
        %369 = vmatprep.subr.mxu0 0.0
        %370 = vmatpush1.msra.mxu0 0.0
        %371 = vmatprep.subr.mxu0 0.0
        %372 = vmatpush1.msra.mxu0 0.0
        %373 = vmatprep.subr.mxu0 0.0
        %374 = vmatpush1.msra.mxu0 0.0
        %375 = vmatprep.subr.mxu0 %v343
        %376 = vmatpush1.msra.mxu0 %v340
        %377 = vmatprep.subr.mxu0 0.0
        %378 = vmatpush2.msra.mxu0 0.0
        %379 = vmatprep.subr.mxu0 0.0
        %380 = vmatpush2.msra.mxu0 0.0
        %381 = vmatprep.subr.mxu0 0.0
        %382 = vmatpush2.msra.mxu0 0.0
        %383 = vmatprep.subr.mxu0 0.0
        %384 = vmatpush2.msra.mxu0 0.0
        %385 = vmatprep.subr.mxu0 0.0
        %386 = vmatpush2.msra.mxu0 0.0
        %387 = vmatprep.subr.mxu0 0.0
        %388 = vmatpush2.msra.mxu0 0.0
        %389 = vmatprep.subr.mxu0 0.0
        %390 = vmatpush2.msra.mxu0 0.0
        %391 = vmatprep.subr.mxu0 0.0
        %392 = vmatpush2.msra.mxu0 0.0
        %393 = vmatprep.subr.mxu0 0.0
        %394 = vmatpush2.msra.mxu0 0.0
        %395 = vmatprep.subr.mxu0 0.0
        %396 = vmatpush2.msra.mxu0 0.0
        %397 = vmatprep.subr.mxu0 0.0
        %398 = vmatpush2.msra.mxu0 0.0
        %399 = vmatprep.subr.mxu0 0.0
        %400 = vmatpush2.msra.mxu0 0.0
        %401 = vmatprep.subr.mxu0 0.0
        %402 = vmatpush2.msra.mxu0 0.0
        %403 = vmatprep.subr.mxu0 0.0
        %404 = vmatpush2.msra.mxu0 0.0
        %405 = vmatprep.subr.mxu0 0.0
        %406 = vmatpush2.msra.mxu0 0.0
        %407 = vmatprep.subr.mxu0 0.0
        %408 = vmatpush2.msra.mxu0 0.0
        %409 = vmatprep.mubr.f32.mxu0 0.0
        %410 = vmatmul.mubr.f32.gmra.mxu0 %v337
        %v411 = vpop.f32.mrf.mxu0
        %v412 = vadd.f32 %v333, %v411
        %v413 = vpop.f32.mrf.mxu0
        %v414 = vadd.f32 %v333, %v413
        %415 = vdwg.mxu0
        %v416 = vmax.f32 %v412, 0.0
        %v417 = vmax.f32 %v414, 0.0
        %v420 = vcombine.low %v416, %v417
        %422 = vst [vmem:[%s215] sm:$0xff] %v420
        %s423 = sand.u32 %s131, 1
        %s424 = scalar_lea.sflag [#allocation3], %s423
        %s425 = sand.u32 %s131, 1
        %s426 = smul.addr %s425, 8
        %s427 = scalar_lea.vmem [#allocation2], %s426
        // Predicated region
        $region37: #{tpu_custom_call.1} parent=35 // pred_check
          %p428 = pneg %p141
        $region38: #{tpu_custom_call.1} parent=35 // pred_check_branch
          %430 = sbr.rel (%p428) target = $region40
        $region39: #{tpu_custom_call.1} parent=35 // pred_region
          %s431 = smul.u32 2, %s23
          %s433 = ssub.s32 128, 128
          %434 = vsyncadd %s424, %s433
          %s435 = smul.addr %s22, 2
          %s436 = sadd.s32 %s431, %s435
          %s437 = smul.addr %s436, 64
          %s438 = scalar_lea.hbm %s4, %s437
          %s440 = sshll.u32 %s427, 4
          %s441 = int_to_ptr.vmem [resolvable:$true] %s440
          %443 = dma.vmem_to_hbm [thread:$0]  %s441, 128, %s438, %s424
        $region40: #{tpu_custom_call.1} parent=35 // pred_fallthru
          _
      $region36: #{tpu_custom_call.1} parent=5 // pred_fallthru
        _
      %p444 = scmp.le.s32.totalorder 2, %s13
      // Predicated region
      $region41: #{tpu_custom_call.1} parent=5 // pred_check
        %p445 = pneg %p444
      $region42: #{tpu_custom_call.1} parent=5 // pred_check_branch
        %447 = sbr.rel (%p445) target = $region44
      $region43: #{tpu_custom_call.1} parent=5 // pred_region
        %s448 = ssub.s32 %s13, 2
        // Predicated region
        $region45: #{tpu_custom_call.1} parent=43 // pred_check
          %p449 = pneg %p147
        $region46: #{tpu_custom_call.1} parent=43 // pred_check_branch
          %451 = sbr.rel (%p449) target = $region48
        $region47: #{tpu_custom_call.1} parent=43 // pred_region
          %s452 = sand.u32 %s132, 1
          %s453 = scalar_lea.sflag [#allocation3], %s452
          %s454 = sand.u32 %s132, 1
          %s455 = smul.addr %s454, 8
          %s456 = scalar_lea.vmem [#allocation2], %s455
          %457 = dma.done %s453, 128
        $region48: #{tpu_custom_call.1} parent=43 // pred_fallthru
          _
      $region44: #{tpu_custom_call.1} parent=5 // pred_fallthru
        _
    $region6: #{tpu_custom_call.1} parent=1 // loop_footer
      %s17 = sadd.s32 1, %s13
    $region7: #{tpu_custom_call.1} parent=1 // loop_footer_branch
      %12 = sbr.rel target = $region3
    $region8: #{tpu_custom_call.1} parent=1 // loop_exit
      _
    %458 = vsyncpa [#allocation3], 1
    %s459 = scalar_lea.sflag [#allocation3], 1
    %460 = vsyncpa %s459, 1

</llo_original>
